<compile_context>
chip_gen: v7x
topology: tpu7x:2x2x1
jax: 0.10.0
libtpu: 0.0.40
codegen_flags: <defaults>
</compile_context>

<pallas_src>
import functools

import jax
import jax.numpy as jnp
from jax.experimental import pallas as pl
from jax.experimental.pallas import tpu as pltpu


# ------------------------------ Pallas kernel -------------------------------

def _make_kernel(act):
    """out(tc, tm) = act(W(tc,K) @ P(K,tm) + b(tc,1)); act in {None, "elu"}."""

    def kernel(p_ref, w_ref, b_ref, o_ref):
        acc = jnp.dot(w_ref[...], p_ref[...],
                      preferred_element_type=jnp.float32)
        acc = acc + b_ref[...]                      # (tc, 1) broadcast over lanes
        if act == "elu":
            # torch ELU(alpha=1) on the f32 accumulator (epilogue fusion).
            acc = jnp.where(acc > 0.0, acc,
                            jnp.exp(jnp.minimum(acc, 0.0)) - 1.0)
        o_ref[...] = acc.astype(o_ref.dtype)

    return kernel


# ----------------------------- tiling heuristics -----------------------------

@functools.lru_cache(maxsize=1)
def _num_tensorcores():
    """2 on parts with two TensorCores worth of grid parallelism per chip
    (v7x; v4/v5p megacore), else 1 (v5e/v6e)."""
    try:
        kind = jax.devices()[0].device_kind.lower()
    except Exception:
        return 1
    if "v7" in kind or "7x" in kind:
        return 2
    if "v4" in kind or "v5p" in kind:
        return 2
    return 1


def _pick_tm(M, K, n_cores):
    """Largest lane-aligned tile of M (bigger tiles amortize the ~0.35 us/step
    overhead of this HBM-bound stream; 2048 allowed when K is small).  On
    multi-TensorCore parts prefer >=2 tiles per core so both cores get work
    and each core's pipeline still has something to overlap."""
    cands = (2048, 1024, 512, 256, 128) if K <= 256 else (1024, 512, 256, 128)
    divs = [t for t in cands if M % t == 0]
    if not divs:
        return 128                               # rare: padded tail
    if n_cores > 1:
        for want in (2 * n_cores, n_cores):
            for t in divs:
                if M // t >= want:
                    return t
    return divs[0]


def _pick_tc(Cout, n_m, n_cores):
    """Split Cout (sublane axis) only when the M grid alone cannot occupy all
    TensorCores; blocks stay a multiple of 8 sublanes."""
    tc = Cout
    if n_cores <= 1:
        return tc
    while (n_m * (Cout // tc) < 2 * n_cores
           and tc % 2 == 0 and (tc // 2) % 8 == 0):
        tc //= 2
    return tc


def _vmem_limit(K, tm, tc, out_itemsize):
    """Scoped-VMEM limit from real tile bytes (double-buffered streams +
    resident weights + f32 epilogue temp), clamped to v7x's 64 MiB physical."""
    need = (2 * K * tm * 2 +                 # 2x bf16 patch tiles
            2 * tc * tm * out_itemsize +     # 2x output tiles
            tc * tm * 4 +                    # f32 accumulator / epilogue temp
            tc * (K * 2 + 4))                # resident weights + bias
    return int(min(64 << 20, max(16 << 20, 2 * need)))


# ------------------------------- GEMM wrapper --------------------------------

def conv_gemm(patches, w, b, *, act=None, out_dtype=jnp.float32, n_cores=1):
    """patches: (K, M) bf16; w: (Cout, K) bf16; b: (Cout,).  M on the lane axis."""
    K, M = patches.shape
    Cout = w.shape[0]

    tm = _pick_tm(M, K, n_cores)
    n_m = pl.cdiv(M, tm)
    Mp = n_m * tm
    if Mp != M:                                  # only if M has no 128-divisor
        patches = jnp.pad(patches, ((0, 0), (0, Mp - M)))

    tc = _pick_tc(Cout, n_m, n_cores)
    n_c = Cout // tc

    b2d = b.reshape(Cout, 1).astype(jnp.float32)
    out_itemsize = jnp.dtype(out_dtype).itemsize

    if n_c == 1:
        grid = (n_m,)
        in_specs = [
            pl.BlockSpec((K, tm), lambda i: (0, i)),      # streamed patches
            pl.BlockSpec((Cout, K), lambda i: (0, 0)),    # resident weights
            pl.BlockSpec((Cout, 1), lambda i: (0, 0)),    # resident bias
        ]
        out_specs = pl.BlockSpec((Cout, tm), lambda i: (0, i))   # lane-dense
        dims = ("parallel",)
    else:
        # Only when M alone cannot keep every TensorCore busy (v7x / megacore).
        grid = (n_c, n_m)
        in_specs = [
            pl.BlockSpec((K, tm), lambda c, i: (0, i)),
            pl.BlockSpec((tc, K), lambda c, i: (c, 0)),
            pl.BlockSpec((tc, 1), lambda c, i: (c, 0)),
        ]
        out_specs = pl.BlockSpec((tc, tm), lambda c, i: (c, i))
        dims = ("parallel", "parallel")

    out = pl.pallas_call(
        _make_kernel(act),
        out_shape=jax.ShapeDtypeStruct((Cout, Mp), out_dtype),
        grid_spec=pltpu.PrefetchScalarGridSpec(
            num_scalar_prefetch=0,
            grid=grid,
            in_specs=in_specs,
            out_specs=out_specs,
        ),
        compiler_params=pltpu.CompilerParams(
            dimension_semantics=dims,
            vmem_limit_bytes=_vmem_limit(K, tm, tc, out_itemsize),
        ),
    )(patches, w, b2d)
    return out[:, :M] if Mp != M else out


# -------------------------------- JAX glue -----------------------------------

def im2col_t(x, kh, kw, sh, sw):
    """x: (C, B, H, W). Returns ((C*kh*kw, B*Ho*Wo), Ho, Wo); K ordered (C, kh, kw)."""
    C, B, H, W = x.shape
    Ho = (H - kh) // sh + 1
    Wo = (W - kw) // sw + 1
    cols = []
    for di in range(kh):
        for dj in range(kw):
            cols.append(x[:, :, di:di + sh * Ho:sh, dj:dj + sw * Wo:sw])
    p = jnp.stack(cols, axis=1)                         # (C, kh*kw, B, Ho, Wo)
    return p.reshape(C * kh * kw, B * Ho * Wo), Ho, Wo


def weight_norm_init(v, eps=1e-12):
    """torch weight_norm(dim=0) right after init: g = ||v||  =>  w == v."""
    norm = jnp.sqrt(jnp.sum(v * v, axis=(1, 2, 3), keepdims=True))
    g = norm
    return g * v / jnp.maximum(norm, eps)


def stft_unit_forward(x, params, *, N, m, s_t, s_f, compute_dtype=jnp.bfloat16):
    B, C, H, W = x.shape
    n_cores = _num_tensorcores()
    x_t = jnp.transpose(x, (1, 0, 2, 3))                # (C, B, H, W) chan-major

    # --- conv1 (3x3, 'same'): ReLU folded into the pad/cast (free XLA fusion),
    #     ELU fused into the kernel epilogue (once per y1 element). ---
    x1p = jnp.pad(jnp.maximum(x_t, 0.0),
                  ((0, 0), (0, 0), (1, 1), (1, 1))).astype(compute_dtype)
    p1, H1, W1 = im2col_t(x1p, 3, 3, 1, 1)              # (C*9, B*H*W)
    w1 = params["w1"].reshape(N, -1).astype(compute_dtype)         # (N, C*9)
    y1 = conv_gemm(p1, w1, params["b1"], act="elu",
                   out_dtype=compute_dtype, n_cores=n_cores)       # (N, B*H*W)
    y1 = y1.reshape(N, B, H1, W1)                       # free reshape, chan-major

    # --- conv2 ((s_t+2, s_f+2), stride, pad (1,1)) + skip as ONE GEMM:
    #     [W2 | Ws] @ [P2 ; Ps] + (b2 + bs). ---
    y1p = jnp.pad(y1, ((0, 0), (0, 0), (1, 1), (1, 1)))
    p2, Ho, Wo = im2col_t(y1p, s_t + 2, s_f + 2, s_t, s_f)
    ps, Hs, Ws = im2col_t(x_t.astype(compute_dtype), s_t, s_f, s_t, s_f)
    assert (Hs, Ws) == (Ho, Wo)
    w2 = params["w2"].reshape(m * N, -1).astype(compute_dtype)     # (m*N, N*k2)
    ws = params["ws"].reshape(m * N, -1).astype(compute_dtype)     # (m*N, C*st*sf)
    p_cat = jnp.concatenate([p2, ps], axis=0)           # (N*k2 + C*st*sf, M)
    w_cat = jnp.concatenate([w2, ws], axis=1)

    out = conv_gemm(p_cat, w_cat, params["b2"] + params["bs"],
                    act=None, out_dtype=jnp.float32, n_cores=n_cores)

    out = out.reshape(m * N, B, Ho, Wo)
    return jnp.transpose(out, (1, 0, 2, 3))             # back to NCHW


# ---------------------- pure-f32 reference (XLA convs) ------------------------

def stft_unit_reference(x, params, *, s_t, s_f):
    dn = ("NCHW", "OIHW", "NCHW")
    r = jax.lax.conv_general_dilated(jnp.maximum(x, 0.0), params["w1"],
                                     (1, 1), ((1, 1), (1, 1)),
                                     dimension_numbers=dn)
    r = r + params["b1"][None, :, None, None]
    r = jnp.where(r > 0, r, jnp.expm1(r))               # ELU
    r = jax.lax.conv_general_dilated(r, params["w2"], (s_t, s_f),
                                     ((1, 1), (1, 1)), dimension_numbers=dn)
    r = r + params["b2"][None, :, None, None]
    s = jax.lax.conv_general_dilated(x, params["ws"], (s_t, s_f),
                                     "VALID", dimension_numbers=dn)
    s = s + params["bs"][None, :, None, None]
    return r + s


# ---------------------------------- main --------------------------------------

if __name__ == "__main__":
    B, C, H, W = 2, 4, 16, 16
    N, m, s_t, s_f = 8, 2, 2, 2

    key = jax.random.PRNGKey(0)
    keys = jax.random.split(key, 7)
    x = jax.random.normal(keys[0], (B, C, H, W), jnp.float32)

    # Deterministic parameter init (PyTorch OIHW layout), weight-normalized.
    v1 = jax.random.normal(keys[1], (N, C, 3, 3), jnp.float32) * 0.1
    b1 = jax.random.normal(keys[2], (N,), jnp.float32) * 0.1
    v2 = jax.random.normal(keys[3], (m * N, N, s_t + 2, s_f + 2), jnp.float32) * 0.1
    b2 = jax.random.normal(keys[4], (m * N,), jnp.float32) * 0.1
    vs = jax.random.normal(keys[5], (m * N, C, s_t, s_f), jnp.float32) * 0.1
    bs = jax.random.normal(keys[6], (m * N,), jnp.float32) * 0.1

    params = dict(
        w1=weight_norm_init(v1), b1=b1,
        w2=weight_norm_init(v2), b2=b2,
        ws=weight_norm_init(vs), bs=bs,
    )

    fwd = jax.jit(functools.partial(stft_unit_forward, N=N, m=m, s_t=s_t, s_f=s_f))
    out = fwd(x, params)
    jax.block_until_ready(out)
    assert out.shape == (B, m * N, H // s_t, W // s_f), out.shape

    # Tolerance check against a pure-f32 XLA reference (bf16 patches/weights/y1
    # quantize the Pallas path; a layout/ordering bug would be O(0.5) off).
    ref = stft_unit_reference(x, params, s_t=s_t, s_f=s_f)
    max_err = float(jnp.max(jnp.abs(out - ref)))
    assert max_err < 1e-1, f"max abs error vs f32 reference: {max_err}"

    print("KERNEL_OK")
</pallas_src>

<mosaic_0001>
module attributes {stable_mosaic.version = 11 : i64} {
  func.func @kernel(%arg0: i32, %arg1: memref<36x512xbf16, #tpu.memory_space<vmem>>, %arg2: memref<8x36xbf16, #tpu.memory_space<vmem>>, %arg3: memref<8x1xf32, #tpu.memory_space<vmem>>, %arg4: memref<8x512xbf16, #tpu.memory_space<vmem>>) attributes {dimension_semantics = [#tpu.dimension_semantics<parallel>], iteration_bounds = array<i64: 1>, scalar_prefetch = 0 : i64, scratch_operands = 0 : i64, tpu.core_type = #tpu.core_type<tc>, window_params = [{transform_indices = @transform_0, window_bounds = array<i64: 36, 512>}, {pipeline_mode = #tpu.pipeline_mode<synchronous>, transform_indices = @transform_1, window_bounds = array<i64: 8, 36>}, {pipeline_mode = #tpu.pipeline_mode<synchronous>, transform_indices = @transform_2, window_bounds = array<i64: 8, 1>}, {transform_indices = @transform_3, window_bounds = array<i64: 8, 512>}]} {
    %c0 = arith.constant 0 : index
    %c0_0 = arith.constant 0 : index
    %0 = vector.load %arg2[%c0, %c0_0] : memref<8x36xbf16, #tpu.memory_space<vmem>>, vector<8x36xbf16>
    %c0_1 = arith.constant 0 : index
    %c0_2 = arith.constant 0 : index
    %1 = vector.load %arg1[%c0_1, %c0_2] : memref<36x512xbf16, #tpu.memory_space<vmem>>, vector<36x512xbf16>
    %cst = arith.constant dense<0.000000e+00> : vector<8x512xf32>
    %2 = tpu.matmul %0, %1, %cst {dimension_numbers = #tpu.dot_dimension_numbers<[1], [0], [0], [1], [0, 0, 1, 1], [], []>} : vector<8x36xbf16>, vector<36x512xbf16>, vector<8x512xf32> -> vector<8x512xf32>
    %c0_3 = arith.constant 0 : index
    %c0_4 = arith.constant 0 : index
    %3 = vector.load %arg3[%c0_3, %c0_4] : memref<8x1xf32, #tpu.memory_space<vmem>>, vector<8x1xf32>
    %4 = vector.broadcast %3 : vector<8x1xf32> to vector<8x512xf32>
    %5 = arith.addf %2, %4 : vector<8x512xf32>
    %cst_5 = arith.constant 0.000000e+00 : f32
    %6 = vector.broadcast %cst_5 : f32 to vector<8x512xf32>
    %7 = arith.cmpf ogt, %5, %6 : vector<8x512xf32>
    %cst_6 = arith.constant 0.000000e+00 : f32
    %8 = vector.broadcast %cst_6 : f32 to vector<8x512xf32>
    %9 = arith.minimumf %5, %8 : vector<8x512xf32>
    %10 = math.exp %9 : vector<8x512xf32>
    %cst_7 = arith.constant 1.000000e+00 : f32
    %11 = vector.broadcast %cst_7 : f32 to vector<8x512xf32>
    %12 = arith.subf %10, %11 : vector<8x512xf32>
    %13 = arith.select %7, %5, %12 : vector<8x512xi1>, vector<8x512xf32>
    %14 = arith.truncf %13 : vector<8x512xf32> to vector<8x512xbf16>
    %c0_8 = arith.constant 0 : index
    %c0_9 = arith.constant 0 : index
    %15 = vector.load %arg4[%c0_8, %c0_9] : memref<8x512xbf16, #tpu.memory_space<vmem>>, vector<8x512xbf16>
    tpu.vector_store %arg4[%c0_8, %c0_9], %14 {strides = array<i32>} : memref<8x512xbf16, #tpu.memory_space<vmem>>, vector<8x512xbf16>,
    return
  }
  func.func @transform_0(%arg0: i32) -> (i32, i32) {
    %c0_i32 = arith.constant 0 : i32
    %c0_i32_0 = arith.constant 0 : i32
    return %c0_i32, %arg0 : i32, i32
  }
  func.func @transform_1(%arg0: i32) -> (i32, i32) {
    %c0_i32 = arith.constant 0 : i32
    %c0_i32_0 = arith.constant 0 : i32
    %c0_i32_1 = arith.constant 0 : i32
    return %c0_i32, %c0_i32_0 : i32, i32
  }
  func.func @transform_2(%arg0: i32) -> (i32, i32) {
    %c0_i32 = arith.constant 0 : i32
    %c0_i32_0 = arith.constant 0 : i32
    %c0_i32_1 = arith.constant 0 : i32
    return %c0_i32, %c0_i32_0 : i32, i32
  }
  func.func @transform_3(%arg0: i32) -> (i32, i32) {
    %c0_i32 = arith.constant 0 : i32
    %c0_i32_0 = arith.constant 0 : i32
    return %c0_i32, %arg0 : i32, i32
  }
}

module attributes {stable_mosaic.version = 11 : i64} {
  func.func @kernel(%arg0: i32, %arg1: memref<144x128xbf16, #tpu.memory_space<vmem>>, %arg2: memref<16x144xbf16, #tpu.memory_space<vmem>>, %arg3: memref<16x1xf32, #tpu.memory_space<vmem>>, %arg4: memref<16x128xf32, #tpu.memory_space<vmem>>) attributes {dimension_semantics = [#tpu.dimension_semantics<parallel>], iteration_bounds = array<i64: 1>, scalar_prefetch = 0 : i64, scratch_operands = 0 : i64, tpu.core_type = #tpu.core_type<tc>, window_params = [{transform_indices = @transform_0, window_bounds = array<i64: 144, 128>}, {pipeline_mode = #tpu.pipeline_mode<synchronous>, transform_indices = @transform_1, window_bounds = array<i64: 16, 144>}, {pipeline_mode = #tpu.pipeline_mode<synchronous>, transform_indices = @transform_2, window_bounds = array<i64: 16, 1>}, {transform_indices = @transform_3, window_bounds = array<i64: 16, 128>}]} {
    %c0 = arith.constant 0 : index
    %c0_0 = arith.constant 0 : index
    %0 = vector.load %arg2[%c0, %c0_0] : memref<16x144xbf16, #tpu.memory_space<vmem>>, vector<16x144xbf16>
    %c0_1 = arith.constant 0 : index
    %c0_2 = arith.constant 0 : index
    %1 = vector.load %arg1[%c0_1, %c0_2] : memref<144x128xbf16, #tpu.memory_space<vmem>>, vector<144x128xbf16>
    %cst = arith.constant dense<0.000000e+00> : vector<16x128xf32>
    %2 = tpu.matmul %0, %1, %cst {dimension_numbers = #tpu.dot_dimension_numbers<[1], [0], [0], [1], [0, 0, 1, 1], [], []>} : vector<16x144xbf16>, vector<144x128xbf16>, vector<16x128xf32> -> vector<16x128xf32>
    %c0_3 = arith.constant 0 : index
    %c0_4 = arith.constant 0 : index
    %3 = vector.load %arg3[%c0_3, %c0_4] : memref<16x1xf32, #tpu.memory_space<vmem>>, vector<16x1xf32>
    %4 = vector.broadcast %3 : vector<16x1xf32> to vector<16x128xf32>
    %5 = arith.addf %2, %4 : vector<16x128xf32>
    %c0_5 = arith.constant 0 : index
    %c0_6 = arith.constant 0 : index
    %6 = vector.load %arg4[%c0_5, %c0_6] : memref<16x128xf32, #tpu.memory_space<vmem>>, vector<16x128xf32>
    tpu.vector_store %arg4[%c0_5, %c0_6], %5 {strides = array<i32>} : memref<16x128xf32, #tpu.memory_space<vmem>>, vector<16x128xf32>,
    return
  }
  func.func @transform_0(%arg0: i32) -> (i32, i32) {
    %c0_i32 = arith.constant 0 : i32
    %c0_i32_0 = arith.constant 0 : i32
    return %c0_i32, %arg0 : i32, i32
  }
  func.func @transform_1(%arg0: i32) -> (i32, i32) {
    %c0_i32 = arith.constant 0 : i32
    %c0_i32_0 = arith.constant 0 : i32
    %c0_i32_1 = arith.constant 0 : i32
    return %c0_i32, %c0_i32_0 : i32, i32
  }
  func.func @transform_2(%arg0: i32) -> (i32, i32) {
    %c0_i32 = arith.constant 0 : i32
    %c0_i32_0 = arith.constant 0 : i32
    %c0_i32_1 = arith.constant 0 : i32
    return %c0_i32, %c0_i32_0 : i32, i32
  }
  func.func @transform_3(%arg0: i32) -> (i32, i32) {
    %c0_i32 = arith.constant 0 : i32
    %c0_i32_0 = arith.constant 0 : i32
    return %c0_i32, %arg0 : i32, i32
  }
}

</mosaic_0001>

<llo_original>
// kernel: stft_unit_forward.2
$region0: #{stft_unit_forward.2}
  #allocation0 [shape = 'u32[]', space=smem, size = 0x4, offset = 0x4, fixed_abs, tag = 'smem constant byte address 0x4 - core index']
  #allocation1 [shape = 'u32[144,128]{1,0:T(1,128)}', space=vmem, size = 0x12000, scoped, tag = 'internal scratch']
  %s0 = inlined_call_operand.vmem [shape: bf16[36,512], index: 0, kind: input, shape index: {}]
  %s1 = inlined_call_operand.vmem [shape: bf16[8,36], index: 1, kind: input, shape index: {}]
  %s2 = inlined_call_operand.vmem [shape: f32[8,1], index: 2, kind: input, shape index: {}]
  %s3 = inlined_call_operand.vmem [shape: bf16[8,512], index: 3, kind: output, shape index: {}]
  %s4 = sld [smem:[#allocation0]]
  $region22: #{stft_unit_forward.2} parent=0
    _
  %s6 = ssub.s32 1, %s4
  %s7 = scalar_select 0, %s6, %s4
  // Predicated region
  $region2: #{stft_unit_forward.2} parent=0 // pred_check
    _
  $region3: #{stft_unit_forward.2} parent=0 // pred_check_branch
    %9 = sbr.rel (0) target = $region5
  $region4: #{stft_unit_forward.2} parent=0 // pred_region
    _
  $region5: #{stft_unit_forward.2} parent=0 // pred_fallthru
    _
  // Predicated region
  $region6: #{stft_unit_forward.2} parent=0 // pred_check
    _
  $region7: #{stft_unit_forward.2} parent=0 // pred_check_branch
    %11 = sbr.rel (0) target = $region9
  $region8: #{stft_unit_forward.2} parent=0 // pred_region
    _
  $region9: #{stft_unit_forward.2} parent=0 // pred_fallthru
    _
  // Predicated region
  $region10: #{stft_unit_forward.2} parent=0 // pred_check
    _
  $region11: #{stft_unit_forward.2} parent=0 // pred_check_branch
    %13 = sbr.rel (0) target = $region13
  $region12: #{stft_unit_forward.2} parent=0 // pred_region
    _
  $region13: #{stft_unit_forward.2} parent=0 // pred_fallthru
    _
  %v15 = vld [vmem:[%s1] sm:$0xf]
  %v16 = vld [vmem:[%s0] sm:$0xff]
  %v17 = vld [vmem:[%s0 + $0x8] sm:$0xff]
  %v18 = vld [vmem:[%s0 + $0x10] sm:$0xff]
  %v19 = vld [vmem:[%s0 + $0x18] sm:$0xff]
  %v20 = vld [vmem:[%s0 + $0x20] sm:$0xff]
  %v21 = vld [vmem:[%s0 + $0x28] sm:$0xff]
  %v22 = vld [vmem:[%s0 + $0x30] sm:$0xff]
  %v23 = vld [vmem:[%s0 + $0x38] sm:$0xff]
  %v24 = vld [vmem:[%s0 + $0x40] sm:$0x33]
  %v25 = vld [vmem:[%s0 + $0x48] sm:$0x33]
  %v26 = vld [vmem:[%s2] sm:$0xff]
  %28 = vset.pattern.permute.xlu0 0
  %29 = vperm.xlu0 %28, %v26
  %v30 = vpop.permute.xlu0 %29
  %v42 = vunpack.c.l.b16 %v16
  %v43 = vunpack.c.h.b16 %v16
  %v44 = vunpack.c.l.b16 %v17
  %v45 = vunpack.c.h.b16 %v17
  %v46 = vunpack.c.l.b16 %v18
  %v47 = vunpack.c.h.b16 %v18
  %v48 = vunpack.c.l.b16 %v19
  %v49 = vunpack.c.h.b16 %v19
  %v50 = vunpack.c.l.b16 %v20
  %v51 = vunpack.c.h.b16 %v20
  %v52 = vunpack.c.l.b16 %v21
  %v53 = vunpack.c.h.b16 %v21
  %v54 = vunpack.c.l.b16 %v22
  %v55 = vunpack.c.h.b16 %v22
  %v56 = vunpack.c.l.b16 %v23
  %v57 = vunpack.c.h.b16 %v23
  %v58 = vunpack.c.l.b16 %v24
  %v59 = vunpack.c.h.b16 %v24
  %v60 = vunpack.c.l.b16 %v25
  %v61 = vunpack.c.h.b16 %v25
  %v62 = vpack.c.b16 %v46, %v42
  %v63 = vpack.c.b16 %v47, %v43
  %v64 = vpack.c.b16 %v48, %v44
  %v65 = vpack.c.b16 %v49, %v45
  %v66 = vpack.c.b16 %v54, %v50
  %v67 = vpack.c.b16 %v55, %v51
  %v68 = vpack.c.b16 %v56, %v52
  %v69 = vpack.c.b16 %v57, %v53
  %v70 = vpack.c.b16 %v58, %v58
  %v71 = vpack.c.b16 %v59, %v59
  %v72 = vpack.c.b16 %v60, %v60
  %v73 = vpack.c.b16 %v61, %v61
  %vm82 = vcmask 293888
  %v84 = vsel %vm82, %v15, 0
  %vm86 = vcmask 1041408
  %v88 = vsel %vm86, %v70, 0
  %v91 = vsel %vm86, %v71, 0
  %v94 = vsel %vm86, %v72, 0
  %v97 = vsel %vm86, %v73, 0
  %99 = vmatprep.subr.bf16.mxu0 %v63
  %100 = vmatpush1.bf16.msra.mxu0 %v62
  %101 = vmatprep.subr.bf16.mxu0 %v67
  %102 = vmatpush1.bf16.msra.mxu0 %v66
  %103 = vmatprep.subr.bf16.mxu0 %v91
  %104 = vmatpush1.bf16.msra.mxu0 %v88
  %105 = vmatprep.subr.bf16.mxu0 0
  %106 = vmatpush1.bf16.msra.mxu0 0
  %107 = vmatprep.subr.bf16.mxu0 0
  %108 = vmatpush1.bf16.msra.mxu0 0
  %109 = vmatprep.subr.bf16.mxu0 0
  %110 = vmatpush1.bf16.msra.mxu0 0
  %111 = vmatprep.subr.bf16.mxu0 0
  %112 = vmatpush1.bf16.msra.mxu0 0
  %113 = vmatprep.subr.bf16.mxu0 0
  %114 = vmatpush1.bf16.msra.mxu0 0
  %115 = vmatprep.subr.bf16.mxu0 0
  %116 = vmatpush1.bf16.msra.mxu0 0
  %117 = vmatprep.subr.bf16.mxu0 0
  %118 = vmatpush1.bf16.msra.mxu0 0
  %119 = vmatprep.subr.bf16.mxu0 0
  %120 = vmatpush1.bf16.msra.mxu0 0
  %121 = vmatprep.subr.bf16.mxu0 0
  %122 = vmatpush1.bf16.msra.mxu0 0
  %123 = vmatprep.subr.bf16.mxu0 0
  %124 = vmatpush1.bf16.msra.mxu0 0
  %125 = vmatprep.subr.bf16.mxu0 0
  %126 = vmatpush1.bf16.msra.mxu0 0
  %127 = vmatprep.subr.bf16.mxu0 0
  %128 = vmatpush1.bf16.msra.mxu0 0
  %129 = vmatprep.subr.bf16.mxu0 0
  %130 = vmatpush1.bf16.msra.mxu0 0
  %131 = vmatprep.mubr.bf16.mxu0 0
  %132 = vmatmul.mubr.bf16.gmra.mrb[0].mxu0 %v84
  %v133 = vpop.f32.mrb[0].mxu0
  %v134 = vadd.f32 %v30, %v133
  %v135 = vpop.f32.mrb[0].mxu0
  %v136 = vadd.f32 %v30, %v135
  %v137 = vpop.f32.mrb[0].mxu0
  %v138 = vpop.f32.mrb[0].mxu0
  %139 = vdwg.mxu0
  %140 = vmatprep.subr.bf16.mxu0 %v65
  %141 = vmatpush1.bf16.msra.mxu0 %v64
  %142 = vmatprep.subr.bf16.mxu0 %v69
  %143 = vmatpush1.bf16.msra.mxu0 %v68
  %144 = vmatprep.subr.bf16.mxu0 %v97
  %145 = vmatpush1.bf16.msra.mxu0 %v94
  %146 = vmatprep.subr.bf16.mxu0 0
  %147 = vmatpush1.bf16.msra.mxu0 0
  %148 = vmatprep.subr.bf16.mxu0 0
  %149 = vmatpush1.bf16.msra.mxu0 0
  %150 = vmatprep.subr.bf16.mxu0 0
  %151 = vmatpush1.bf16.msra.mxu0 0
  %152 = vmatprep.subr.bf16.mxu0 0
  %153 = vmatpush1.bf16.msra.mxu0 0
  %154 = vmatprep.subr.bf16.mxu0 0
  %155 = vmatpush1.bf16.msra.mxu0 0
  %156 = vmatprep.subr.bf16.mxu0 0
  %157 = vmatpush1.bf16.msra.mxu0 0
  %158 = vmatprep.subr.bf16.mxu0 0
  %159 = vmatpush1.bf16.msra.mxu0 0
  %160 = vmatprep.subr.bf16.mxu0 0
  %161 = vmatpush1.bf16.msra.mxu0 0
  %162 = vmatprep.subr.bf16.mxu0 0
  %163 = vmatpush1.bf16.msra.mxu0 0
  %164 = vmatprep.subr.bf16.mxu0 0
  %165 = vmatpush1.bf16.msra.mxu0 0
  %166 = vmatprep.subr.bf16.mxu0 0
  %167 = vmatpush1.bf16.msra.mxu0 0
  %168 = vmatprep.subr.bf16.mxu0 0
  %169 = vmatpush1.bf16.msra.mxu0 0
  %170 = vmatprep.subr.bf16.mxu0 0
  %171 = vmatpush1.bf16.msra.mxu0 0
  %172 = vmatprep.mubr.bf16.mxu0 0
  %173 = vmatmul.mubr.bf16.gmra.mrb[0].mxu0 %v84
  %v174 = vpop.f32.mrb[0].mxu0
  %v175 = vadd.f32 %v30, %v174
  %v176 = vpop.f32.mrb[0].mxu0
  %v177 = vadd.f32 %v30, %v176
  %v178 = vpop.f32.mrb[0].mxu0
  %v179 = vpop.f32.mrb[0].mxu0
  %180 = vdwg.mxu0
  %vm181 = vcmp.gt.f32.partialorder %v134, 0.0
  %vm182 = vcmp.gt.f32.partialorder %v136, 0.0
  %vm183 = vcmp.gt.f32.partialorder %v175, 0.0
  %vm184 = vcmp.gt.f32.partialorder %v177, 0.0
  %v185 = vmin.f32 %v134, 0.0
  %v186 = vmin.f32 %v136, 0.0
  %v187 = vmin.f32 %v175, 0.0
  %v188 = vmin.f32 %v177, 0.0
  %v189 = vmul.f32 %v185, 1.442695
  %v190 = vpow.pop %v189
  %v191 = vmul.f32 %v186, 1.442695
  %v192 = vpow.pop %v191
  %v193 = vmul.f32 %v187, 1.442695
  %v194 = vpow.pop %v193
  %v195 = vmul.f32 %v188, 1.442695
  %v196 = vpow.pop %v195
  %v197 = vsub.f32 %v190, 1.0
  %v198 = vsub.f32 %v192, 1.0
  %v199 = vsub.f32 %v194, 1.0
  %v200 = vsub.f32 %v196, 1.0
  %v201 = vsel %vm181, %v134, %v197
  %v202 = vsel %vm182, %v136, %v198
  %v203 = vsel %vm183, %v175, %v199
  %v204 = vsel %vm184, %v177, %v200
  %v205 = vpack.c.bf16 %v201, %v201
  %v206 = vpack.c.bf16 %v202, %v202
  %v207 = vpack.c.bf16 %v203, %v203
  %v208 = vpack.c.bf16 %v204, %v204
  %v213 = vunpack.c.l.b16 %v205
  %v214 = vunpack.c.l.b16 %v206
  %v215 = vunpack.c.l.b16 %v207
  %v216 = vunpack.c.l.b16 %v208
  %v217 = vpack.c.b16 %v214, %v213
  %v218 = vpack.c.b16 %v216, %v215
  %221 = vst [vmem:[%s3] sm:$0xff] %v217
  %222 = vst [vmem:[%s3 + $0x8] sm:$0xff] %v218
  // Predicated region
  $region14: #{stft_unit_forward.2} parent=0 // pred_check
    _
  $region15: #{stft_unit_forward.2} parent=0 // pred_check_branch
    %224 = sbr.rel (0) target = $region17
  $region16: #{stft_unit_forward.2} parent=0 // pred_region
    _
  $region17: #{stft_unit_forward.2} parent=0 // pred_fallthru
    _
  // Predicated region
  $region18: #{stft_unit_forward.2} parent=0 // pred_check
    _
  $region19: #{stft_unit_forward.2} parent=0 // pred_check_branch
    %226 = sbr.rel (0) target = $region21
  $region20: #{stft_unit_forward.2} parent=0 // pred_region
    _
  $region21: #{stft_unit_forward.2} parent=0 // pred_fallthru
    _

// kernel: stft_unit_forward.3
$region0: #{stft_unit_forward.3}
  #allocation0 [shape = 'u32[]', space=smem, size = 0x4, offset = 0x4, fixed_abs, tag = 'smem constant byte address 0x4 - core index']
  #allocation1 [shape = 'u32[144,128]{1,0:T(1,128)}', space=vmem, size = 0x12000, scoped, tag = 'internal scratch']
  %s0 = inlined_call_operand.vmem [shape: bf16[144,128], index: 0, kind: input, shape index: {}]
  %s1 = inlined_call_operand.vmem [shape: bf16[16,144], index: 1, kind: input, shape index: {}]
  %s2 = inlined_call_operand.vmem [shape: f32[16,1], index: 2, kind: input, shape index: {}]
  %s3 = inlined_call_operand.vmem [shape: f32[16,128], index: 3, kind: output, shape index: {}]
  %s4 = sld [smem:[#allocation0]]
  $region22: #{stft_unit_forward.3} parent=0
    _
  %s6 = ssub.s32 1, %s4
  %s7 = scalar_select 0, %s6, %s4
  // Predicated region
  $region2: #{stft_unit_forward.3} parent=0 // pred_check
    _
  $region3: #{stft_unit_forward.3} parent=0 // pred_check_branch
    %9 = sbr.rel (0) target = $region5
  $region4: #{stft_unit_forward.3} parent=0 // pred_region
    _
  $region5: #{stft_unit_forward.3} parent=0 // pred_fallthru
    _
  // Predicated region
  $region6: #{stft_unit_forward.3} parent=0 // pred_check
    _
  $region7: #{stft_unit_forward.3} parent=0 // pred_check_branch
    %11 = sbr.rel (0) target = $region9
  $region8: #{stft_unit_forward.3} parent=0 // pred_region
    _
  $region9: #{stft_unit_forward.3} parent=0 // pred_fallthru
    _
  // Predicated region
  $region10: #{stft_unit_forward.3} parent=0 // pred_check
    _
  $region11: #{stft_unit_forward.3} parent=0 // pred_check_branch
    %13 = sbr.rel (0) target = $region13
  $region12: #{stft_unit_forward.3} parent=0 // pred_region
    _
  $region13: #{stft_unit_forward.3} parent=0 // pred_fallthru
    _
  %v15 = vld [vmem:[%s1] sm:$0xff]
  %v16 = vld [vmem:[%s1 + $0x8] sm:$0xff]
  %v17 = vld [vmem:[%s0] sm:$0xf]
  %v18 = vld [vmem:[%s0 + $0x4] sm:$0xf]
  %v19 = vld [vmem:[%s0 + $0x8] sm:$0xf]
  %v20 = vld [vmem:[%s0 + $0xc] sm:$0xf]
  %v21 = vld [vmem:[%s0 + $0x10] sm:$0xf]
  %v22 = vld [vmem:[%s0 + $0x14] sm:$0xf]
  %v23 = vld [vmem:[%s0 + $0x18] sm:$0xf]
  %v24 = vld [vmem:[%s0 + $0x1c] sm:$0xf]
  %v25 = vld [vmem:[%s0 + $0x20] sm:$0xf]
  %v26 = vld [vmem:[%s0 + $0x24] sm:$0xf]
  %v27 = vld [vmem:[%s0 + $0x28] sm:$0xf]
  %v28 = vld [vmem:[%s0 + $0x2c] sm:$0xf]
  %v29 = vld [vmem:[%s0 + $0x30] sm:$0xf]
  %v30 = vld [vmem:[%s0 + $0x34] sm:$0xf]
  %v31 = vld [vmem:[%s0 + $0x38] sm:$0xf]
  %v32 = vld [vmem:[%s0 + $0x3c] sm:$0xf]
  %v33 = vld [vmem:[%s0 + $0x40] sm:$0xf]
  %v34 = vld [vmem:[%s0 + $0x44] sm:$0xf]
  %v35 = vld [vmem:[%s2] sm:$0xff]
  %v36 = vld [vmem:[%s2 + $0x8] sm:$0xff]
  %38 = vset.pattern.permute.xlu0 0
  %39 = vperm.xlu0 %38, %v35
  %v40 = vpop.permute.xlu0 %39
  %43 = vset.pattern.permute.xlu0 0
  %44 = vperm.xlu0 %43, %v36
  %v45 = vpop.permute.xlu0 %44
  %v49 = vunpack.c.l.b16 %v15
  %v50 = vunpack.c.h.b16 %v15
  %v51 = vunpack.c.l.b16 %v16
  %v52 = vunpack.c.h.b16 %v16
  %v53 = vpack.c.b16 %v51, %v49
  %v54 = vpack.c.b16 %v52, %v50
  %v74 = vunpack.c.l.b16 %v17
  %v75 = vunpack.c.l.b16 %v18
  %v76 = vunpack.c.l.b16 %v19
  %v77 = vunpack.c.l.b16 %v20
  %v78 = vunpack.c.l.b16 %v21
  %v79 = vunpack.c.l.b16 %v22
  %v80 = vunpack.c.l.b16 %v23
  %v81 = vunpack.c.l.b16 %v24
  %v82 = vunpack.c.l.b16 %v25
  %v83 = vunpack.c.l.b16 %v26
  %v84 = vunpack.c.l.b16 %v27
  %v85 = vunpack.c.l.b16 %v28
  %v86 = vunpack.c.l.b16 %v29
  %v87 = vunpack.c.l.b16 %v30
  %v88 = vunpack.c.l.b16 %v31
  %v89 = vunpack.c.l.b16 %v32
  %v90 = vunpack.c.l.b16 %v33
  %v91 = vunpack.c.l.b16 %v34
  %v92 = vpack.c.b16 %v75, %v74
  %v93 = vpack.c.b16 %v77, %v76
  %v94 = vpack.c.b16 %v79, %v78
  %v95 = vpack.c.b16 %v81, %v80
  %v96 = vpack.c.b16 %v83, %v82
  %v97 = vpack.c.b16 %v85, %v84
  %v98 = vpack.c.b16 %v87, %v86
  %v99 = vpack.c.b16 %v89, %v88
  %v100 = vpack.c.b16 %v91, %v90
  %vm110 = vcmask 130048
  %v112 = vsel %vm110, %v54, 0
  %114 = vmatprep.subr.bf16.mxu0 0
  %115 = vmatpush1.bf16.msra.mxu0 %v92
  %116 = vmatprep.subr.bf16.mxu0 0
  %117 = vmatpush1.bf16.msra.mxu0 %v93
  %118 = vmatprep.subr.bf16.mxu0 0
  %119 = vmatpush1.bf16.msra.mxu0 %v94
  %120 = vmatprep.subr.bf16.mxu0 0
  %121 = vmatpush1.bf16.msra.mxu0 %v95
  %122 = vmatprep.subr.bf16.mxu0 0
  %123 = vmatpush1.bf16.msra.mxu0 %v96
  %124 = vmatprep.subr.bf16.mxu0 0
  %125 = vmatpush1.bf16.msra.mxu0 %v97
  %126 = vmatprep.subr.bf16.mxu0 0
  %127 = vmatpush1.bf16.msra.mxu0 %v98
  %128 = vmatprep.subr.bf16.mxu0 0
  %129 = vmatpush1.bf16.msra.mxu0 %v99
  %130 = vmatprep.subr.bf16.mxu0 0
  %131 = vmatpush1.bf16.msra.mxu0 %v100
  %132 = vmatprep.subr.bf16.mxu0 0
  %133 = vmatpush1.bf16.msra.mxu0 0
  %134 = vmatprep.subr.bf16.mxu0 0
  %135 = vmatpush1.bf16.msra.mxu0 0
  %136 = vmatprep.subr.bf16.mxu0 0
  %137 = vmatpush1.bf16.msra.mxu0 0
  %138 = vmatprep.subr.bf16.mxu0 0
  %139 = vmatpush1.bf16.msra.mxu0 0
  %140 = vmatprep.subr.bf16.mxu0 0
  %141 = vmatpush1.bf16.msra.mxu0 0
  %142 = vmatprep.subr.bf16.mxu0 0
  %143 = vmatpush1.bf16.msra.mxu0 0
  %144 = vmatprep.subr.bf16.mxu0 0
  %145 = vmatpush1.bf16.msra.mxu0 0
  %146 = vmatprep.mubr.bf16.mxu0 %v112
  %147 = vmatmul.mubr.bf16.gmra.mrb[0].mxu0 %v53
  %v148 = vpop.f32.mrb[0].mxu0
  %v149 = vadd.f32 %v40, %v148
  %v150 = vpop.f32.mrb[0].mxu0
  %v151 = vpop.f32.mrb[0].mxu0
  %v152 = vadd.f32 %v45, %v151
  %v153 = vpop.f32.mrb[0].mxu0
  %154 = vdwg.mxu0
  %155 = vst [vmem:[%s3] sm:$0xff] %v149
  %156 = vst [vmem:[%s3 + $0x8] sm:$0xff] %v152
  // Predicated region
  $region14: #{stft_unit_forward.3} parent=0 // pred_check
    _
  $region15: #{stft_unit_forward.3} parent=0 // pred_check_branch
    %158 = sbr.rel (0) target = $region17
  $region16: #{stft_unit_forward.3} parent=0 // pred_region
    _
  $region17: #{stft_unit_forward.3} parent=0 // pred_fallthru
    _
  // Predicated region
  $region18: #{stft_unit_forward.3} parent=0 // pred_check
    _
  $region19: #{stft_unit_forward.3} parent=0 // pred_check_branch
    %160 = sbr.rel (0) target = $region21
  $region20: #{stft_unit_forward.3} parent=0 // pred_region
    _
  $region21: #{stft_unit_forward.3} parent=0 // pred_fallthru
    _

</llo_original>
